<compile_context>
chip_gen: v5e
topology: v5e:2x2
jax: 0.10.0
libtpu: 0.0.40
codegen_flags: <defaults>
</compile_context>

<pallas_src>
import functools

import jax
import jax.numpy as jnp
import numpy as np
from jax import lax
from jax.experimental import pallas as pl
from jax.experimental.pallas import tpu as pltpu


def _mha_kernel(q_ref, k_ref, v_ref, wq_ref, wk_ref, wv_ref, wo_ref, o_ref,
                *, num_heads, key_hidden_dim, head_dim, normalise):
    # q_ref: [Bb, Nt, key_dim], k_ref: [Bb, Nc, key_dim], v_ref: [Bb, Nc, value_dim]
    # wq_ref/wk_ref: [key_dim, H*Kh]   (attention scale already folded into wq)
    # wv_ref:        [value_dim, H*Dh]
    # wo_ref:        [H*Dh, value_dim]
    Bb, Nt, key_dim = q_ref.shape
    _, Nc, value_dim = v_ref.shape
    H, Kh, Dh = num_heads, key_hidden_dim, head_dim
    cdt = wq_ref.dtype  # bf16 compute dtype for MXU operands

    # Collapse (batch, seq) leading dims (layout-free), cast once to bf16.
    qf = q_ref[...].reshape(Bb * Nt, key_dim).astype(cdt)
    kf = k_ref[...].reshape(Bb * Nc, key_dim).astype(cdt)
    vf = v_ref[...].reshape(Bb * Nc, value_dim).astype(cdt)

    # ---- fused projections across heads: one wide matmul each --------------
    q_all = jnp.dot(qf, wq_ref[...], preferred_element_type=jnp.float32).astype(cdt)  # [Bb*Nt, H*Kh]
    k_all = jnp.dot(kf, wk_ref[...], preferred_element_type=jnp.float32).astype(cdt)  # [Bb*Nc, H*Kh]
    v_all = jnp.dot(vf, wv_ref[...], preferred_element_type=jnp.float32).astype(cdt)  # [Bb*Nc, H*Dh]

    # ---- per-head attention (static head loop; H is small) -----------------
    ctx_heads = []
    for h in range(H):
        Q3 = q_all[:, h * Kh:(h + 1) * Kh].reshape(Bb, Nt, Kh)   # static lane slice
        K3 = k_all[:, h * Kh:(h + 1) * Kh].reshape(Bb, Nc, Kh)
        V3 = v_all[:, h * Dh:(h + 1) * Dh].reshape(Bb, Nc, Dh)

        # Scores: batched over Bb, contracting the last axis of both operands
        # (K is consumed untransposed).  Scale already folded into wq.
        s = lax.dot_general(
            Q3, K3,
            dimension_numbers=(((2,), (2,)), ((0,), (0,))),
            preferred_element_type=jnp.float32)                  # [Bb, Nt, Nc] f32

        if normalise:
            m = jnp.max(s, axis=-1, keepdims=True)
            e = jnp.exp(s - m)
            denom = jnp.sum(e, axis=-1, keepdims=True)
            attn = e * pl.reciprocal(denom, approx=True)         # EUP divide
        else:
            attn = jax.nn.sigmoid(s)

        ctx = lax.dot_general(
            attn.astype(cdt), V3,
            dimension_numbers=(((2,), (1,)), ((0,), (0,))),
            preferred_element_type=jnp.float32)                  # [Bb, Nt, Dh]
        ctx_heads.append(ctx.reshape(Bb * Nt, Dh).astype(cdt))

    # ---- fused output projection: concat heads along lanes, one K=H*Dh matmul
    ctx_all = jnp.concatenate(ctx_heads, axis=-1) if H > 1 else ctx_heads[0]  # [Bb*Nt, H*Dh]
    out = jnp.dot(ctx_all, wo_ref[...], preferred_element_type=jnp.float32)   # [Bb*Nt, value_dim]

    o_ref[...] = out.reshape(Bb, Nt, value_dim).astype(o_ref.dtype)


_TARGET_ROWS = 256  # fill the 256-wide MXU M dimension on v6e/v7x (>=2x128 on v5e)


def multi_head_attention(queries, keys, values, params, *,
                         num_heads, key_hidden_dim, normalise=True,
                         block_b=None, compute_dtype=jnp.bfloat16):
    """queries: [B, Nt, key_dim], keys: [B, Nc, key_dim], values: [B, Nc, value_dim]."""
    wq, wk, wv, wo = params  # stored [in, out] (transposed vs. torch Linear.weight)
    B, Nt, key_dim = queries.shape
    _, Nc, value_dim = values.shape
    head_dim = value_dim // num_heads
    H, Kh, Dh = num_heads, key_hidden_dim, head_dim

    # ---- one-time parameter prep (plain XLA, outside the kernel) -----------
    scale = np.float32(1.0 / np.sqrt(key_hidden_dim))
    wq_c = (wq * scale).astype(compute_dtype)   # [key_dim, H*Kh]
    wk_c = wk.astype(compute_dtype)             # [key_dim, H*Kh]
    wv_c = wv.astype(compute_dtype)             # [value_dim, H*Dh]
    wo_c = wo.astype(compute_dtype)             # [H*Dh, value_dim]

    # ---- batch blocking ------------------------------------------------------
    if block_b is None:
        block_b = max(1, min(B, _TARGET_ROWS // max(Nt, 1)))
        # Keep >= 2 grid steps when possible so ("parallel",) can shard across
        # the two TensorCores on v7x instead of idling one.
        if B > 1 and pl.cdiv(B, block_b) < 2:
            block_b = pl.cdiv(B, 2)
    num_blocks = pl.cdiv(B, block_b)
    B_pad = num_blocks * block_b
    if B_pad != B:
        # Pad the batch instead of shrinking block_b (keeps the MXU M dim full).
        pad = ((0, B_pad - B), (0, 0), (0, 0))
        queries = jnp.pad(queries, pad)
        keys = jnp.pad(keys, pad)
        values = jnp.pad(values, pad)

    # ---- scheduling hint (cost estimate) ------------------------------------
    flops = 2 * B_pad * (
        Nt * key_dim * H * Kh          # Q projection
        + Nc * key_dim * H * Kh        # K projection
        + Nc * value_dim * H * Dh      # V projection
        + H * Nt * Nc * Kh             # scores
        + H * Nt * Nc * Dh             # attn @ V
        + Nt * H * Dh * value_dim)     # output projection
    transcendentals = B_pad * H * Nt * Nc
    in_itemsize = jnp.dtype(queries.dtype).itemsize
    io_bytes = (B_pad * (Nt * key_dim + Nc * key_dim + Nc * value_dim
                         + Nt * value_dim) * in_itemsize
                + 2 * (wq_c.size + wk_c.size + wv_c.size + wo_c.size))

    # ---- explicit VMEM limit (safe on v7x's 64 MiB physical VMEM) ----------
    act_bytes = 4 * block_b * (Nt * key_dim + Nc * key_dim + Nc * value_dim
                               + Nt * value_dim)
    tmp_bytes = 4 * block_b * (Nt * H * Kh + Nc * (H * Kh + H * Dh)
                               + H * Nt * Nc + Nt * H * Dh)
    wgt_bytes = 2 * (wq_c.size + wk_c.size + wv_c.size + wo_c.size)
    vmem_limit = int(min(48 * 2**20,
                         max(16 * 2**20, 4 * (act_bytes + tmp_bytes + wgt_bytes))))

    kernel = functools.partial(
        _mha_kernel, num_heads=H, key_hidden_dim=Kh, head_dim=Dh,
        normalise=normalise)

    out = pl.pallas_call(
        kernel,
        out_shape=jax.ShapeDtypeStruct((B_pad, Nt, value_dim), queries.dtype),
        grid_spec=pltpu.PrefetchScalarGridSpec(
            num_scalar_prefetch=0,
            grid=(num_blocks,),
            in_specs=[
                pl.BlockSpec((block_b, Nt, key_dim), lambda b: (b, 0, 0)),
                pl.BlockSpec((block_b, Nc, key_dim), lambda b: (b, 0, 0)),
                pl.BlockSpec((block_b, Nc, value_dim), lambda b: (b, 0, 0)),
                # Weights: constant index_map -> fetched once, VMEM-resident.
                pl.BlockSpec((key_dim, H * Kh), lambda b: (0, 0)),
                pl.BlockSpec((key_dim, H * Kh), lambda b: (0, 0)),
                pl.BlockSpec((value_dim, H * Dh), lambda b: (0, 0)),
                pl.BlockSpec((H * Dh, value_dim), lambda b: (0, 0)),
            ],
            out_specs=pl.BlockSpec((block_b, Nt, value_dim), lambda b: (b, 0, 0)),
        ),
        compiler_params=pltpu.CompilerParams(
            dimension_semantics=("parallel",),
            vmem_limit_bytes=vmem_limit),
        cost_estimate=pl.CostEstimate(
            flops=int(flops),
            transcendentals=int(transcendentals),
            bytes_accessed=int(io_bytes)),
    )(queries, keys, values, wq_c, wk_c, wv_c, wo_c)

    return out[:B] if B_pad != B else out


def _reference(queries, keys, values, params, *, num_heads, key_hidden_dim,
               normalise=True):
    """Pure-JAX (f32) replica of the PyTorch forward for validation."""
    wq, wk, wv, wo = params
    B, Nt, _ = queries.shape
    _, Nc, value_dim = values.shape
    head_dim = value_dim // num_heads

    Q = (queries @ wq).reshape(B, Nt, num_heads, key_hidden_dim).transpose(0, 2, 1, 3)
    K = (keys @ wk).reshape(B, Nc, num_heads, key_hidden_dim).transpose(0, 2, 1, 3)
    V = (values @ wv).reshape(B, Nc, num_heads, head_dim).transpose(0, 2, 1, 3)

    s = jnp.einsum("bhtk,bhck->bhtc", Q, K) / np.sqrt(key_hidden_dim)
    attn = jax.nn.softmax(s, axis=-1) if normalise else jax.nn.sigmoid(s)
    out = jnp.einsum("bhtc,bhcd->bhtd", attn, V)
    out = out.transpose(0, 2, 1, 3).reshape(B, Nt, num_heads * head_dim)
    return out @ wo


if __name__ == "__main__":
    # Module hyperparameters (small, consistent with the constructor).
    key_dim = 32
    value_dim = 32
    num_heads = 4
    key_hidden_dim = 16
    head_dim = value_dim // num_heads

    B, Nt, Nc = 2, 8, 8

    root = jax.random.PRNGKey(0)
    k_q, k_k, k_v, k_wq, k_wk, k_wv, k_wo = jax.random.split(root, 7)

    queries = jax.random.normal(k_q, (B, Nt, key_dim), dtype=jnp.float32)
    keys = jax.random.normal(k_k, (B, Nc, key_dim), dtype=jnp.float32)
    values = jax.random.normal(k_v, (B, Nc, value_dim), dtype=jnp.float32)

    # Deterministic nn.Linear-style (bias=False) weights, stored as [in, out]
    # (i.e. already transposed relative to PyTorch's [out, in]).
    def init_linear(key, in_dim, out_dim):
        bound = 1.0 / np.sqrt(in_dim)
        return jax.random.uniform(key, (in_dim, out_dim), jnp.float32,
                                  minval=-bound, maxval=bound)

    wq = init_linear(k_wq, key_dim, num_heads * key_hidden_dim)
    wk = init_linear(k_wk, key_dim, num_heads * key_hidden_dim)
    wv = init_linear(k_wv, value_dim, num_heads * head_dim)
    wo = init_linear(k_wo, num_heads * head_dim, value_dim)
    params = (wq, wk, wv, wo)

    for normalise in (True, False):   # softmax and sigmoid attention paths
        out = multi_head_attention(
            queries, keys, values, params,
            num_heads=num_heads, key_hidden_dim=key_hidden_dim,
            normalise=normalise)
        out = jax.block_until_ready(out)

        ref = _reference(queries, keys, values, params,
                         num_heads=num_heads, key_hidden_dim=key_hidden_dim,
                         normalise=normalise)

        assert out.shape == (B, Nt, value_dim), out.shape
        # bf16 matmul operands (f32 accumulation) -> bf16-level tolerance.
        np.testing.assert_allclose(np.asarray(out), np.asarray(ref),
                                   rtol=3e-2, atol=3e-2)

    print("KERNEL_OK")
</pallas_src>

<mosaic_0001>
module attributes {stable_mosaic.version = 11 : i64} {
  func.func @_mha_kernel(%arg0: i32, %arg1: memref<1x8x32xf32, #tpu.memory_space<vmem>>, %arg2: memref<1x8x32xf32, #tpu.memory_space<vmem>>, %arg3: memref<1x8x32xf32, #tpu.memory_space<vmem>>, %arg4: memref<32x64xbf16, #tpu.memory_space<vmem>>, %arg5: memref<32x64xbf16, #tpu.memory_space<vmem>>, %arg6: memref<32x32xbf16, #tpu.memory_space<vmem>>, %arg7: memref<32x32xbf16, #tpu.memory_space<vmem>>, %arg8: memref<1x8x32xf32, #tpu.memory_space<vmem>>) attributes {dimension_semantics = [#tpu.dimension_semantics<parallel>], iteration_bounds = array<i64: 2>, scalar_prefetch = 0 : i64, scratch_operands = 0 : i64, tpu.core_type = #tpu.core_type<tc>, window_params = [{transform_indices = @transform_0, window_bounds = array<i64: 1, 8, 32>}, {transform_indices = @transform_1, window_bounds = array<i64: 1, 8, 32>}, {transform_indices = @transform_2, window_bounds = array<i64: 1, 8, 32>}, {pipeline_mode = #tpu.pipeline_mode<synchronous>, transform_indices = @transform_3, window_bounds = array<i64: 32, 64>}, {pipeline_mode = #tpu.pipeline_mode<synchronous>, transform_indices = @transform_4, window_bounds = array<i64: 32, 64>}, {pipeline_mode = #tpu.pipeline_mode<synchronous>, transform_indices = @transform_5, window_bounds = array<i64: 32, 32>}, {pipeline_mode = #tpu.pipeline_mode<synchronous>, transform_indices = @transform_6, window_bounds = array<i64: 32, 32>}, {transform_indices = @transform_7, window_bounds = array<i64: 1, 8, 32>}]} {
    %c0 = arith.constant 0 : index
    %c0_0 = arith.constant 0 : index
    %c0_1 = arith.constant 0 : index
    %0 = vector.load %arg1[%c0, %c0_0, %c0_1] : memref<1x8x32xf32, #tpu.memory_space<vmem>>, vector<1x8x32xf32>
    %1 = vector.shape_cast %0 : vector<1x8x32xf32> to vector<8x32xf32>
    %2 = arith.truncf %1 : vector<8x32xf32> to vector<8x32xbf16>
    %c0_2 = arith.constant 0 : index
    %c0_3 = arith.constant 0 : index
    %c0_4 = arith.constant 0 : index
    %3 = vector.load %arg2[%c0_2, %c0_3, %c0_4] : memref<1x8x32xf32, #tpu.memory_space<vmem>>, vector<1x8x32xf32>
    %4 = vector.shape_cast %3 : vector<1x8x32xf32> to vector<8x32xf32>
    %5 = arith.truncf %4 : vector<8x32xf32> to vector<8x32xbf16>
    %c0_5 = arith.constant 0 : index
    %c0_6 = arith.constant 0 : index
    %c0_7 = arith.constant 0 : index
    %6 = vector.load %arg3[%c0_5, %c0_6, %c0_7] : memref<1x8x32xf32, #tpu.memory_space<vmem>>, vector<1x8x32xf32>
    %7 = vector.shape_cast %6 : vector<1x8x32xf32> to vector<8x32xf32>
    %8 = arith.truncf %7 : vector<8x32xf32> to vector<8x32xbf16>
    %c0_8 = arith.constant 0 : index
    %c0_9 = arith.constant 0 : index
    %9 = vector.load %arg4[%c0_8, %c0_9] : memref<32x64xbf16, #tpu.memory_space<vmem>>, vector<32x64xbf16>
    %cst = arith.constant dense<0.000000e+00> : vector<8x64xf32>
    %10 = tpu.matmul %2, %9, %cst {dimension_numbers = #tpu.dot_dimension_numbers<[1], [0], [0], [1], [0, 0, 1, 1], [], []>} : vector<8x32xbf16>, vector<32x64xbf16>, vector<8x64xf32> -> vector<8x64xf32>
    %11 = arith.truncf %10 : vector<8x64xf32> to vector<8x64xbf16>
    %c0_10 = arith.constant 0 : index
    %c0_11 = arith.constant 0 : index
    %12 = vector.load %arg5[%c0_10, %c0_11] : memref<32x64xbf16, #tpu.memory_space<vmem>>, vector<32x64xbf16>
    %cst_12 = arith.constant dense<0.000000e+00> : vector<8x64xf32>
    %13 = tpu.matmul %5, %12, %cst_12 {dimension_numbers = #tpu.dot_dimension_numbers<[1], [0], [0], [1], [0, 0, 1, 1], [], []>} : vector<8x32xbf16>, vector<32x64xbf16>, vector<8x64xf32> -> vector<8x64xf32>
    %14 = arith.truncf %13 : vector<8x64xf32> to vector<8x64xbf16>
    %c0_13 = arith.constant 0 : index
    %c0_14 = arith.constant 0 : index
    %15 = vector.load %arg6[%c0_13, %c0_14] : memref<32x32xbf16, #tpu.memory_space<vmem>>, vector<32x32xbf16>
    %cst_15 = arith.constant dense<0.000000e+00> : vector<8x32xf32>
    %16 = tpu.matmul %8, %15, %cst_15 {dimension_numbers = #tpu.dot_dimension_numbers<[1], [0], [0], [1], [0, 0, 1, 1], [], []>} : vector<8x32xbf16>, vector<32x32xbf16>, vector<8x32xf32> -> vector<8x32xf32>
    %17 = arith.truncf %16 : vector<8x32xf32> to vector<8x32xbf16>
    %18 = vector.extract_strided_slice %11 {offsets = [0, 0], sizes = [8, 16], strides = [1, 1]} : vector<8x64xbf16> to vector<8x16xbf16>
    %19 = vector.shape_cast %18 : vector<8x16xbf16> to vector<1x8x16xbf16>
    %20 = vector.extract_strided_slice %14 {offsets = [0, 0], sizes = [8, 16], strides = [1, 1]} : vector<8x64xbf16> to vector<8x16xbf16>
    %21 = vector.shape_cast %20 : vector<8x16xbf16> to vector<1x8x16xbf16>
    %22 = vector.extract_strided_slice %17 {offsets = [0, 0], sizes = [8, 8], strides = [1, 1]} : vector<8x32xbf16> to vector<8x8xbf16>
    %23 = vector.shape_cast %22 : vector<8x8xbf16> to vector<1x8x8xbf16>
    %cst_16 = arith.constant dense<0.000000e+00> : vector<1x8x8xf32>
    %24 = tpu.matmul %19, %21, %cst_16 {dimension_numbers = #tpu.dot_dimension_numbers<[2], [2], [1], [1], [0, 0, 0, 1, 1, 1], [0], [0]>} : vector<1x8x16xbf16>, vector<1x8x16xbf16>, vector<1x8x8xf32> -> vector<1x8x8xf32>
    %cst_17 = arith.constant dense<0xFF800000> : vector<1x8xf32>
    %25 = vector.multi_reduction <maximumf>, %24, %cst_17 [2] : vector<1x8x8xf32> to vector<1x8xf32>
    %26 = vector.shape_cast %25 : vector<1x8xf32> to vector<1x8x1xf32>
    %27 = vector.broadcast %26 : vector<1x8x1xf32> to vector<1x8x8xf32>
    %28 = arith.subf %24, %27 : vector<1x8x8xf32>
    %29 = math.exp %28 : vector<1x8x8xf32>
    %cst_18 = arith.constant dense<0.000000e+00> : vector<1x8xf32>
    %30 = vector.multi_reduction <add>, %29, %cst_18 [2] : vector<1x8x8xf32> to vector<1x8xf32>
    %31 = vector.shape_cast %30 : vector<1x8xf32> to vector<1x8x1xf32>
    %32 = tpu.reciprocal %31 {approx = true} : vector<1x8x1xf32> -> vector<1x8x1xf32>
    %33 = vector.broadcast %32 : vector<1x8x1xf32> to vector<1x8x8xf32>
    %34 = arith.mulf %29, %33 : vector<1x8x8xf32>
    %35 = arith.truncf %34 : vector<1x8x8xf32> to vector<1x8x8xbf16>
    %cst_19 = arith.constant dense<0.000000e+00> : vector<1x8x8xf32>
    %36 = tpu.matmul %35, %23, %cst_19 {dimension_numbers = #tpu.dot_dimension_numbers<[2], [1], [1], [2], [0, 0, 0, 1, 1, 2], [0], [0]>} : vector<1x8x8xbf16>, vector<1x8x8xbf16>, vector<1x8x8xf32> -> vector<1x8x8xf32>
    %37 = vector.shape_cast %36 : vector<1x8x8xf32> to vector<8x8xf32>
    %38 = arith.truncf %37 : vector<8x8xf32> to vector<8x8xbf16>
    %39 = vector.extract_strided_slice %11 {offsets = [0, 16], sizes = [8, 16], strides = [1, 1]} : vector<8x64xbf16> to vector<8x16xbf16>
    %40 = vector.shape_cast %39 : vector<8x16xbf16> to vector<1x8x16xbf16>
    %41 = vector.extract_strided_slice %14 {offsets = [0, 16], sizes = [8, 16], strides = [1, 1]} : vector<8x64xbf16> to vector<8x16xbf16>
    %42 = vector.shape_cast %41 : vector<8x16xbf16> to vector<1x8x16xbf16>
    %43 = vector.extract_strided_slice %17 {offsets = [0, 8], sizes = [8, 8], strides = [1, 1]} : vector<8x32xbf16> to vector<8x8xbf16>
    %44 = vector.shape_cast %43 : vector<8x8xbf16> to vector<1x8x8xbf16>
    %cst_20 = arith.constant dense<0.000000e+00> : vector<1x8x8xf32>
    %45 = tpu.matmul %40, %42, %cst_20 {dimension_numbers = #tpu.dot_dimension_numbers<[2], [2], [1], [1], [0, 0, 0, 1, 1, 1], [0], [0]>} : vector<1x8x16xbf16>, vector<1x8x16xbf16>, vector<1x8x8xf32> -> vector<1x8x8xf32>
    %cst_21 = arith.constant dense<0xFF800000> : vector<1x8xf32>
    %46 = vector.multi_reduction <maximumf>, %45, %cst_21 [2] : vector<1x8x8xf32> to vector<1x8xf32>
    %47 = vector.shape_cast %46 : vector<1x8xf32> to vector<1x8x1xf32>
    %48 = vector.broadcast %47 : vector<1x8x1xf32> to vector<1x8x8xf32>
    %49 = arith.subf %45, %48 : vector<1x8x8xf32>
    %50 = math.exp %49 : vector<1x8x8xf32>
    %cst_22 = arith.constant dense<0.000000e+00> : vector<1x8xf32>
    %51 = vector.multi_reduction <add>, %50, %cst_22 [2] : vector<1x8x8xf32> to vector<1x8xf32>
    %52 = vector.shape_cast %51 : vector<1x8xf32> to vector<1x8x1xf32>
    %53 = tpu.reciprocal %52 {approx = true} : vector<1x8x1xf32> -> vector<1x8x1xf32>
    %54 = vector.broadcast %53 : vector<1x8x1xf32> to vector<1x8x8xf32>
    %55 = arith.mulf %50, %54 : vector<1x8x8xf32>
    %56 = arith.truncf %55 : vector<1x8x8xf32> to vector<1x8x8xbf16>
    %cst_23 = arith.constant dense<0.000000e+00> : vector<1x8x8xf32>
    %57 = tpu.matmul %56, %44, %cst_23 {dimension_numbers = #tpu.dot_dimension_numbers<[2], [1], [1], [2], [0, 0, 0, 1, 1, 2], [0], [0]>} : vector<1x8x8xbf16>, vector<1x8x8xbf16>, vector<1x8x8xf32> -> vector<1x8x8xf32>
    %58 = vector.shape_cast %57 : vector<1x8x8xf32> to vector<8x8xf32>
    %59 = arith.truncf %58 : vector<8x8xf32> to vector<8x8xbf16>
    %60 = vector.extract_strided_slice %11 {offsets = [0, 32], sizes = [8, 16], strides = [1, 1]} : vector<8x64xbf16> to vector<8x16xbf16>
    %61 = vector.shape_cast %60 : vector<8x16xbf16> to vector<1x8x16xbf16>
    %62 = vector.extract_strided_slice %14 {offsets = [0, 32], sizes = [8, 16], strides = [1, 1]} : vector<8x64xbf16> to vector<8x16xbf16>
    %63 = vector.shape_cast %62 : vector<8x16xbf16> to vector<1x8x16xbf16>
    %64 = vector.extract_strided_slice %17 {offsets = [0, 16], sizes = [8, 8], strides = [1, 1]} : vector<8x32xbf16> to vector<8x8xbf16>
    %65 = vector.shape_cast %64 : vector<8x8xbf16> to vector<1x8x8xbf16>
    %cst_24 = arith.constant dense<0.000000e+00> : vector<1x8x8xf32>
    %66 = tpu.matmul %61, %63, %cst_24 {dimension_numbers = #tpu.dot_dimension_numbers<[2], [2], [1], [1], [0, 0, 0, 1, 1, 1], [0], [0]>} : vector<1x8x16xbf16>, vector<1x8x16xbf16>, vector<1x8x8xf32> -> vector<1x8x8xf32>
    %cst_25 = arith.constant dense<0xFF800000> : vector<1x8xf32>
    %67 = vector.multi_reduction <maximumf>, %66, %cst_25 [2] : vector<1x8x8xf32> to vector<1x8xf32>
    %68 = vector.shape_cast %67 : vector<1x8xf32> to vector<1x8x1xf32>
    %69 = vector.broadcast %68 : vector<1x8x1xf32> to vector<1x8x8xf32>
    %70 = arith.subf %66, %69 : vector<1x8x8xf32>
    %71 = math.exp %70 : vector<1x8x8xf32>
    %cst_26 = arith.constant dense<0.000000e+00> : vector<1x8xf32>
    %72 = vector.multi_reduction <add>, %71, %cst_26 [2] : vector<1x8x8xf32> to vector<1x8xf32>
    %73 = vector.shape_cast %72 : vector<1x8xf32> to vector<1x8x1xf32>
    %74 = tpu.reciprocal %73 {approx = true} : vector<1x8x1xf32> -> vector<1x8x1xf32>
    %75 = vector.broadcast %74 : vector<1x8x1xf32> to vector<1x8x8xf32>
    %76 = arith.mulf %71, %75 : vector<1x8x8xf32>
    %77 = arith.truncf %76 : vector<1x8x8xf32> to vector<1x8x8xbf16>
    %cst_27 = arith.constant dense<0.000000e+00> : vector<1x8x8xf32>
    %78 = tpu.matmul %77, %65, %cst_27 {dimension_numbers = #tpu.dot_dimension_numbers<[2], [1], [1], [2], [0, 0, 0, 1, 1, 2], [0], [0]>} : vector<1x8x8xbf16>, vector<1x8x8xbf16>, vector<1x8x8xf32> -> vector<1x8x8xf32>
    %79 = vector.shape_cast %78 : vector<1x8x8xf32> to vector<8x8xf32>
    %80 = arith.truncf %79 : vector<8x8xf32> to vector<8x8xbf16>
    %81 = vector.extract_strided_slice %11 {offsets = [0, 48], sizes = [8, 16], strides = [1, 1]} : vector<8x64xbf16> to vector<8x16xbf16>
    %82 = vector.shape_cast %81 : vector<8x16xbf16> to vector<1x8x16xbf16>
    %83 = vector.extract_strided_slice %14 {offsets = [0, 48], sizes = [8, 16], strides = [1, 1]} : vector<8x64xbf16> to vector<8x16xbf16>
    %84 = vector.shape_cast %83 : vector<8x16xbf16> to vector<1x8x16xbf16>
    %85 = vector.extract_strided_slice %17 {offsets = [0, 24], sizes = [8, 8], strides = [1, 1]} : vector<8x32xbf16> to vector<8x8xbf16>
    %86 = vector.shape_cast %85 : vector<8x8xbf16> to vector<1x8x8xbf16>
    %cst_28 = arith.constant dense<0.000000e+00> : vector<1x8x8xf32>
    %87 = tpu.matmul %82, %84, %cst_28 {dimension_numbers = #tpu.dot_dimension_numbers<[2], [2], [1], [1], [0, 0, 0, 1, 1, 1], [0], [0]>} : vector<1x8x16xbf16>, vector<1x8x16xbf16>, vector<1x8x8xf32> -> vector<1x8x8xf32>
    %cst_29 = arith.constant dense<0xFF800000> : vector<1x8xf32>
    %88 = vector.multi_reduction <maximumf>, %87, %cst_29 [2] : vector<1x8x8xf32> to vector<1x8xf32>
    %89 = vector.shape_cast %88 : vector<1x8xf32> to vector<1x8x1xf32>
    %90 = vector.broadcast %89 : vector<1x8x1xf32> to vector<1x8x8xf32>
    %91 = arith.subf %87, %90 : vector<1x8x8xf32>
    %92 = math.exp %91 : vector<1x8x8xf32>
    %cst_30 = arith.constant dense<0.000000e+00> : vector<1x8xf32>
    %93 = vector.multi_reduction <add>, %92, %cst_30 [2] : vector<1x8x8xf32> to vector<1x8xf32>
    %94 = vector.shape_cast %93 : vector<1x8xf32> to vector<1x8x1xf32>
    %95 = tpu.reciprocal %94 {approx = true} : vector<1x8x1xf32> -> vector<1x8x1xf32>
    %96 = vector.broadcast %95 : vector<1x8x1xf32> to vector<1x8x8xf32>
    %97 = arith.mulf %92, %96 : vector<1x8x8xf32>
    %98 = arith.truncf %97 : vector<1x8x8xf32> to vector<1x8x8xbf16>
    %cst_31 = arith.constant dense<0.000000e+00> : vector<1x8x8xf32>
    %99 = tpu.matmul %98, %86, %cst_31 {dimension_numbers = #tpu.dot_dimension_numbers<[2], [1], [1], [2], [0, 0, 0, 1, 1, 2], [0], [0]>} : vector<1x8x8xbf16>, vector<1x8x8xbf16>, vector<1x8x8xf32> -> vector<1x8x8xf32>
    %100 = vector.shape_cast %99 : vector<1x8x8xf32> to vector<8x8xf32>
    %101 = arith.truncf %100 : vector<8x8xf32> to vector<8x8xbf16>
    %102 = tpu.concatenate %38, %59, %80, %101 in 1 : vector<8x8xbf16>, vector<8x8xbf16>, vector<8x8xbf16>, vector<8x8xbf16> -> vector<8x32xbf16>
    %c0_32 = arith.constant 0 : index
    %c0_33 = arith.constant 0 : index
    %103 = vector.load %arg7[%c0_32, %c0_33] : memref<32x32xbf16, #tpu.memory_space<vmem>>, vector<32x32xbf16>
    %cst_34 = arith.constant dense<0.000000e+00> : vector<8x32xf32>
    %104 = tpu.matmul %102, %103, %cst_34 {dimension_numbers = #tpu.dot_dimension_numbers<[1], [0], [0], [1], [0, 0, 1, 1], [], []>} : vector<8x32xbf16>, vector<32x32xbf16>, vector<8x32xf32> -> vector<8x32xf32>
    %105 = vector.shape_cast %104 : vector<8x32xf32> to vector<1x8x32xf32>
    %c0_35 = arith.constant 0 : index
    %c0_36 = arith.constant 0 : index
    %c0_37 = arith.constant 0 : index
    %106 = vector.load %arg8[%c0_35, %c0_36, %c0_37] : memref<1x8x32xf32, #tpu.memory_space<vmem>>, vector<1x8x32xf32>
    tpu.vector_store %arg8[%c0_35, %c0_36, %c0_37], %105 {strides = array<i32>} : memref<1x8x32xf32, #tpu.memory_space<vmem>>, vector<1x8x32xf32>,
    return
  }
  func.func @transform_0(%arg0: i32) -> (i32, i32, i32) {
    %c0_i32 = arith.constant 0 : i32
    %c0_i32_0 = arith.constant 0 : i32
    %c0_i32_1 = arith.constant 0 : i32
    return %arg0, %c0_i32, %c0_i32_0 : i32, i32, i32
  }
  func.func @transform_1(%arg0: i32) -> (i32, i32, i32) {
    %c0_i32 = arith.constant 0 : i32
    %c0_i32_0 = arith.constant 0 : i32
    %c0_i32_1 = arith.constant 0 : i32
    return %arg0, %c0_i32, %c0_i32_0 : i32, i32, i32
  }
  func.func @transform_2(%arg0: i32) -> (i32, i32, i32) {
    %c0_i32 = arith.constant 0 : i32
    %c0_i32_0 = arith.constant 0 : i32
    %c0_i32_1 = arith.constant 0 : i32
    return %arg0, %c0_i32, %c0_i32_0 : i32, i32, i32
  }
  func.func @transform_3(%arg0: i32) -> (i32, i32) {
    %c0_i32 = arith.constant 0 : i32
    %c0_i32_0 = arith.constant 0 : i32
    %c0_i32_1 = arith.constant 0 : i32
    return %c0_i32, %c0_i32_0 : i32, i32
  }
  func.func @transform_4(%arg0: i32) -> (i32, i32) {
    %c0_i32 = arith.constant 0 : i32
    %c0_i32_0 = arith.constant 0 : i32
    %c0_i32_1 = arith.constant 0 : i32
    return %c0_i32, %c0_i32_0 : i32, i32
  }
  func.func @transform_5(%arg0: i32) -> (i32, i32) {
    %c0_i32 = arith.constant 0 : i32
    %c0_i32_0 = arith.constant 0 : i32
    %c0_i32_1 = arith.constant 0 : i32
    return %c0_i32, %c0_i32_0 : i32, i32
  }
  func.func @transform_6(%arg0: i32) -> (i32, i32) {
    %c0_i32 = arith.constant 0 : i32
    %c0_i32_0 = arith.constant 0 : i32
    %c0_i32_1 = arith.constant 0 : i32
    return %c0_i32, %c0_i32_0 : i32, i32
  }
  func.func @transform_7(%arg0: i32) -> (i32, i32, i32) {
    %c0_i32 = arith.constant 0 : i32
    %c0_i32_0 = arith.constant 0 : i32
    %c0_i32_1 = arith.constant 0 : i32
    return %arg0, %c0_i32, %c0_i32_0 : i32, i32, i32
  }
}

</mosaic_0001>

<llo_original>
// kernel: tpu_custom_call.1
$region0: #{tpu_custom_call.1}
  #allocation0 [shape = 'u32[]', space=smem, size = 0x4, offset = 0x4, fixed_abs, tag = 'smem constant byte address 0x4 - core index']
  #allocation1 [shape = 'u32[72,128]{1,0:T(1,128)}', space=vmem, size = 0x9000, scoped, tag = 'internal scratch']
  %s0 = inlined_call_operand.hbm [shape: f32[2,8,32], index: 0, kind: input, shape index: {}]
  %s1 = inlined_call_operand.hbm [shape: f32[2,8,32], index: 1, kind: input, shape index: {}]
  %s2 = inlined_call_operand.hbm [shape: f32[2,8,32], index: 2, kind: input, shape index: {}]
  %s3 = inlined_call_operand.hbm [shape: bf16[32,64], index: 3, kind: input, shape index: {}]
  %s4 = inlined_call_operand.hbm [shape: bf16[32,64], index: 4, kind: input, shape index: {}]
  %s5 = inlined_call_operand.hbm [shape: bf16[32,32], index: 5, kind: input, shape index: {}]
  %s6 = inlined_call_operand.hbm [shape: bf16[32,32], index: 6, kind: input, shape index: {}]
  %s7 = inlined_call_operand.hbm [shape: f32[2,8,32], index: 7, kind: output, shape index: {}]
  %s8 = sld [smem:[#allocation0]]
  $region89: #{tpu_custom_call.1} parent=0
    _
  %s10 = ssub.s32 1, %s8
  %s11 = scalar_select 0, %s10, %s8
  $region1: #{tpu_custom_call.1} parent=0
    #allocation2 [shape = 'u8[8192]{0}', space=vmem, size = 0x2000, scoped, tag = 'input window, operand 0']
    #allocation3 [shape = 's32[2]{0}', space=sflag, size = 0x8, scoped, tag = 'scoped memory for tpu_custom_call.1']
    #allocation4 [shape = 's32[2]{0}', space=sflag, size = 0x8, scoped, tag = 'scoped memory for tpu_custom_call.1']
    #allocation5 [shape = 'u8[8192]{0}', space=vmem, size = 0x2000, scoped, tag = 'input window, operand 1']
    #allocation6 [shape = 's32[2]{0}', space=sflag, size = 0x8, scoped, tag = 'scoped memory for tpu_custom_call.1']
    #allocation7 [shape = 'u8[8192]{0}', space=vmem, size = 0x2000, scoped, tag = 'input window, operand 2']
    #allocation8 [shape = 'u8[8192]{0}', space=vmem, size = 0x2000, scoped, tag = 'input window, operand 3, single buffered']
    #allocation9 [shape = 's32[1]{0}', space=sflag, size = 0x4, scoped, tag = 'scoped memory for tpu_custom_call.1']
    #allocation10 [shape = 'u8[8192]{0}', space=vmem, size = 0x2000, scoped, tag = 'input window, operand 4, single buffered']
    #allocation11 [shape = 'u8[8192]{0}', space=vmem, size = 0x2000, scoped, tag = 'input window, operand 5, single buffered']
    #allocation12 [shape = 's32[1]{0}', space=sflag, size = 0x4, scoped, tag = 'scoped memory for tpu_custom_call.1']
    #allocation13 [shape = 'u8[8192]{0}', space=vmem, size = 0x2000, scoped, tag = 'input window, operand 6, single buffered']
    #allocation14 [shape = 'u8[8192]{0}', space=vmem, size = 0x2000, scoped, tag = 'output window, operand 0']
    %12 = vsyncpa [#allocation3], 0
    %s13 = scalar_lea.sflag [#allocation3], 1
    %14 = vsyncpa %s13, 0
    %15 = vsyncpa [#allocation6], 0
    %s16 = scalar_lea.sflag [#allocation6], 1
    %17 = vsyncpa %s16, 0
    %18 = vsyncpa [#allocation9], 0
    %19 = vsyncpa [#allocation12], 0
    %20 = vsyncpa [#allocation4], 0
    %s21 = scalar_lea.sflag [#allocation4], 1
    %22 = vsyncpa %s21, 0
    loop: start=0, step=1, limit=4
    $region2: #{tpu_custom_call.1} parent=1 // loop_pre_header
      _
    $region3: #{tpu_custom_call.1} parent=1 // loop_header
      %s24 = sphi 0, %s28
      %p25 = scmp.ge.s32.totalorder %s24, 4
      %s34 = sphi 0, %s36
      %s37 = sphi 0, %s34
      %s38 = sphi 0, %s37
      %s54 = sphi 0, %s38
      %s60 = sphi 0, %s62
      %s63 = sphi 0, %s60
      %s64 = sphi 0, %s63
      %s80 = sphi 0, %s64
      %s86 = sphi 0, %s88
      %s89 = sphi 0, %s86
      %s90 = sphi 0, %s89
      %s106 = sphi 0, %s90
      %s110 = sphi 0, %s110
      %s112 = sphi 0, %s110
      %s113 = sphi 0, %s112
      %s127 = sphi 0, %s113
      %s131 = sphi 0, %s131
      %s133 = sphi 0, %s131
      %s134 = sphi 0, %s133
      %s148 = sphi 0, %s134
      %s152 = sphi 0, %s152
      %s154 = sphi 0, %s152
      %s155 = sphi 0, %s154
      %s169 = sphi 0, %s155
      %s173 = sphi 0, %s173
      %s175 = sphi 0, %s173
      %s176 = sphi 0, %s175
      %s190 = sphi 0, %s176
      %s196 = sphi 0, %s198
      %s199 = sphi 0, %s196
      %s200 = sphi 0, %s199
      %s216 = sphi 0, %s200
    $region4: #{tpu_custom_call.1} parent=1 // loop_header_branch
      %27 = sbr.rel (%p25) target = $region8
    $region5: #{tpu_custom_call.1} parent=1 // loop_body
      %s29 = ssub.s32 %s24, 1
      %s30 = ssub.s32 %s24, 2
      %s31 = sadd.s32 %s24, 1
      %s32 = ssub.s32 %s24, %s31
      %p33 = scmp.eq.s32.totalorder %s32, 0
      %s35 = sadd.s32 %s34, 1
      %s36 = scalar_select %p33, %s34, %s35
      %p39 = pneg %p33
      %p40 = scmp.eq.s32.totalorder %s24, 1
      %p41 = por %p39, %p40
      %p42 = scmp.ne.s32.totalorder %s34, %s37
      %p43 = scmp.eq.s32.totalorder %s24, 0
      %p44 = por %p42, %p43
      %p45 = scmp.ne.s32.totalorder %s34, %s37
      %p46 = scmp.eq.s32.totalorder %s29, 1
      %p47 = por %p45, %p46
      %p48 = scmp.ne.s32.totalorder %s37, %s38
      %p49 = scmp.eq.s32.totalorder %s29, 0
      %p50 = por %p48, %p49
      %p51 = scmp.ne.s32.totalorder %s37, %s38
      %p52 = scmp.eq.s32.totalorder %s30, 1
      %p53 = por %p51, %p52
      %p55 = scmp.ne.s32.totalorder %s38, %s54
      %p56 = scmp.eq.s32.totalorder %s30, 0
      %p57 = por %p55, %p56
      %s58 = ssub.s32 %s24, %s31
      %p59 = scmp.eq.s32.totalorder %s58, 0
      %s61 = sadd.s32 %s60, 1
      %s62 = scalar_select %p59, %s60, %s61
      %p65 = pneg %p59
      %p66 = scmp.eq.s32.totalorder %s24, 1
      %p67 = por %p65, %p66
      %p68 = scmp.ne.s32.totalorder %s60, %s63
      %p69 = scmp.eq.s32.totalorder %s24, 0
      %p70 = por %p68, %p69
      %p71 = scmp.ne.s32.totalorder %s60, %s63
      %p72 = scmp.eq.s32.totalorder %s29, 1
      %p73 = por %p71, %p72
      %p74 = scmp.ne.s32.totalorder %s63, %s64
      %p75 = scmp.eq.s32.totalorder %s29, 0
      %p76 = por %p74, %p75
      %p77 = scmp.ne.s32.totalorder %s63, %s64
      %p78 = scmp.eq.s32.totalorder %s30, 1
      %p79 = por %p77, %p78
      %p81 = scmp.ne.s32.totalorder %s64, %s80
      %p82 = scmp.eq.s32.totalorder %s30, 0
      %p83 = por %p81, %p82
      %s84 = ssub.s32 %s24, %s31
      %p85 = scmp.eq.s32.totalorder %s84, 0
      %s87 = sadd.s32 %s86, 1
      %s88 = scalar_select %p85, %s86, %s87
      %p91 = pneg %p85
      %p92 = scmp.eq.s32.totalorder %s24, 1
      %p93 = por %p91, %p92
      %p94 = scmp.ne.s32.totalorder %s86, %s89
      %p95 = scmp.eq.s32.totalorder %s24, 0
      %p96 = por %p94, %p95
      %p97 = scmp.ne.s32.totalorder %s86, %s89
      %p98 = scmp.eq.s32.totalorder %s29, 1
      %p99 = por %p97, %p98
      %p100 = scmp.ne.s32.totalorder %s89, %s90
      %p101 = scmp.eq.s32.totalorder %s29, 0
      %p102 = por %p100, %p101
      %p103 = scmp.ne.s32.totalorder %s89, %s90
      %p104 = scmp.eq.s32.totalorder %s30, 1
      %p105 = por %p103, %p104
      %p107 = scmp.ne.s32.totalorder %s90, %s106
      %p108 = scmp.eq.s32.totalorder %s30, 0
      %p109 = por %p107, %p108
      %s111 = sadd.s32 %s110, 1
      %p114 = scmp.eq.s32.totalorder %s24, 1
      %p115 = scmp.ne.s32.totalorder %s110, %s112
      %p116 = scmp.eq.s32.totalorder %s24, 0
      %p117 = por %p115, %p116
      %p118 = scmp.ne.s32.totalorder %s110, %s112
      %p119 = scmp.eq.s32.totalorder %s29, 1
      %p120 = por %p118, %p119
      %p121 = scmp.ne.s32.totalorder %s112, %s113
      %p122 = scmp.eq.s32.totalorder %s29, 0
      %p123 = por %p121, %p122
      %p124 = scmp.ne.s32.totalorder %s112, %s113
      %p125 = scmp.eq.s32.totalorder %s30, 1
      %p126 = por %p124, %p125
      %p128 = scmp.ne.s32.totalorder %s113, %s127
      %p129 = scmp.eq.s32.totalorder %s30, 0
      %p130 = por %p128, %p129
      %s132 = sadd.s32 %s131, 1
      %p135 = scmp.eq.s32.totalorder %s24, 1
      %p136 = scmp.ne.s32.totalorder %s131, %s133
      %p137 = scmp.eq.s32.totalorder %s24, 0
      %p138 = por %p136, %p137
      %p139 = scmp.ne.s32.totalorder %s131, %s133
      %p140 = scmp.eq.s32.totalorder %s29, 1
      %p141 = por %p139, %p140
      %p142 = scmp.ne.s32.totalorder %s133, %s134
      %p143 = scmp.eq.s32.totalorder %s29, 0
      %p144 = por %p142, %p143
      %p145 = scmp.ne.s32.totalorder %s133, %s134
      %p146 = scmp.eq.s32.totalorder %s30, 1
      %p147 = por %p145, %p146
      %p149 = scmp.ne.s32.totalorder %s134, %s148
      %p150 = scmp.eq.s32.totalorder %s30, 0
      %p151 = por %p149, %p150
      %s153 = sadd.s32 %s152, 1
      %p156 = scmp.eq.s32.totalorder %s24, 1
      %p157 = scmp.ne.s32.totalorder %s152, %s154
      %p158 = scmp.eq.s32.totalorder %s24, 0
      %p159 = por %p157, %p158
      %p160 = scmp.ne.s32.totalorder %s152, %s154
      %p161 = scmp.eq.s32.totalorder %s29, 1
      %p162 = por %p160, %p161
      %p163 = scmp.ne.s32.totalorder %s154, %s155
      %p164 = scmp.eq.s32.totalorder %s29, 0
      %p165 = por %p163, %p164
      %p166 = scmp.ne.s32.totalorder %s154, %s155
      %p167 = scmp.eq.s32.totalorder %s30, 1
      %p168 = por %p166, %p167
      %p170 = scmp.ne.s32.totalorder %s155, %s169
      %p171 = scmp.eq.s32.totalorder %s30, 0
      %p172 = por %p170, %p171
      %s174 = sadd.s32 %s173, 1
      %p177 = scmp.eq.s32.totalorder %s24, 1
      %p178 = scmp.ne.s32.totalorder %s173, %s175
      %p179 = scmp.eq.s32.totalorder %s24, 0
      %p180 = por %p178, %p179
      %p181 = scmp.ne.s32.totalorder %s173, %s175
      %p182 = scmp.eq.s32.totalorder %s29, 1
      %p183 = por %p181, %p182
      %p184 = scmp.ne.s32.totalorder %s175, %s176
      %p185 = scmp.eq.s32.totalorder %s29, 0
      %p186 = por %p184, %p185
      %p187 = scmp.ne.s32.totalorder %s175, %s176
      %p188 = scmp.eq.s32.totalorder %s30, 1
      %p189 = por %p187, %p188
      %p191 = scmp.ne.s32.totalorder %s176, %s190
      %p192 = scmp.eq.s32.totalorder %s30, 0
      %p193 = por %p191, %p192
      %s194 = ssub.s32 %s24, %s31
      %p195 = scmp.eq.s32.totalorder %s194, 0
      %s197 = sadd.s32 %s196, 1
      %s198 = scalar_select %p195, %s196, %s197
      %p201 = pneg %p195
      %p202 = scmp.eq.s32.totalorder %s24, 1
      %p203 = por %p201, %p202
      %p204 = scmp.ne.s32.totalorder %s196, %s199
      %p205 = scmp.eq.s32.totalorder %s24, 0
      %p206 = por %p204, %p205
      %p207 = scmp.ne.s32.totalorder %s196, %s199
      %p208 = scmp.eq.s32.totalorder %s29, 1
      %p209 = por %p207, %p208
      %p210 = scmp.ne.s32.totalorder %s199, %s200
      %p211 = scmp.eq.s32.totalorder %s29, 0
      %p212 = por %p210, %p211
      %p213 = scmp.ne.s32.totalorder %s199, %s200
      %p214 = scmp.eq.s32.totalorder %s30, 1
      %p215 = por %p213, %p214
      %p217 = scmp.ne.s32.totalorder %s200, %s216
      %p218 = scmp.eq.s32.totalorder %s30, 0
      %p219 = por %p217, %p218
      %p220 = scmp.le.s32.totalorder 1, %s24
      %p221 = scmp.lt.s32.totalorder %s24, 3
      %p222 = pnand %p220, %p221
      %p223 = pneg %p222
      // Predicated region
      $region9: #{tpu_custom_call.1} parent=5 // pred_check
        _
      $region10: #{tpu_custom_call.1} parent=5 // pred_check_branch
        %225 = sbr.rel (%p222) target = $region12
      $region11: #{tpu_custom_call.1} parent=5 // pred_region
        %s226 = ssub.s32 %s24, 1
        // Predicated region
        $region13: #{tpu_custom_call.1} parent=11 // pred_check
          %p227 = pneg %p123
        $region14: #{tpu_custom_call.1} parent=11 // pred_check_branch
          %229 = sbr.rel (%p227) target = $region16
        $region15: #{tpu_custom_call.1} parent=11 // pred_region
          %231 = vsyncadd [#allocation9], 0
          %s232 = sshll.u32 %s3, 4
          %s233 = int_to_ptr.hbm [resolvable:$true] %s232
          %s234 = sshll.u32 [#allocation8], 4
          %s235 = int_to_ptr.vmem [resolvable:$true] %s234
          %240 = dma.hbm_to_vmem [thread:$0]  %s233, 256, %s235, [#allocation9], 64, 64, 4
        $region16: #{tpu_custom_call.1} parent=11 // pred_fallthru
          _
        // Predicated region
        $region17: #{tpu_custom_call.1} parent=11 // pred_check
          %p241 = pneg %p144
        $region18: #{tpu_custom_call.1} parent=11 // pred_check_branch
          %243 = sbr.rel (%p241) target = $region20
        $region19: #{tpu_custom_call.1} parent=11 // pred_region
          %245 = vsyncadd [#allocation9], 0
          %s246 = sshll.u32 %s4, 4
          %s247 = int_to_ptr.hbm [resolvable:$true] %s246
          %s248 = sshll.u32 [#allocation10], 4
          %s249 = int_to_ptr.vmem [resolvable:$true] %s248
          %254 = dma.hbm_to_vmem [thread:$0]  %s247, 256, %s249, [#allocation9], 64, 64, 4
        $region20: #{tpu_custom_call.1} parent=11 // pred_fallthru
          _
        // Predicated region
        $region21: #{tpu_custom_call.1} parent=11 // pred_check
          %p255 = pneg %p165
        $region22: #{tpu_custom_call.1} parent=11 // pred_check_branch
          %257 = sbr.rel (%p255) target = $region24
        $region23: #{tpu_custom_call.1} parent=11 // pred_region
          %259 = vsyncadd [#allocation12], 0
          %s260 = sshll.u32 %s5, 4
          %s261 = int_to_ptr.hbm [resolvable:$true] %s260
          %s262 = sshll.u32 [#allocation11], 4
          %s263 = int_to_ptr.vmem [resolvable:$true] %s262
          %268 = dma.hbm_to_vmem [thread:$0]  %s261, 256, %s263, [#allocation12], 64, 64, 4
        $region24: #{tpu_custom_call.1} parent=11 // pred_fallthru
          _
        // Predicated region
        $region25: #{tpu_custom_call.1} parent=11 // pred_check
          %p269 = pneg %p186
        $region26: #{tpu_custom_call.1} parent=11 // pred_check_branch
          %271 = sbr.rel (%p269) target = $region28
        $region27: #{tpu_custom_call.1} parent=11 // pred_region
          %273 = vsyncadd [#allocation12], 0
          %s274 = sshll.u32 %s6, 4
          %s275 = int_to_ptr.hbm [resolvable:$true] %s274
          %s276 = sshll.u32 [#allocation13], 4
          %s277 = int_to_ptr.vmem [resolvable:$true] %s276
          %282 = dma.hbm_to_vmem [thread:$0]  %s275, 256, %s277, [#allocation12], 64, 64, 4
        $region28: #{tpu_custom_call.1} parent=11 // pred_fallthru
          _
      $region12: #{tpu_custom_call.1} parent=5 // pred_fallthru
        _
      %p283 = scmp.lt.s32.totalorder %s24, 2
      // Predicated region
      $region29: #{tpu_custom_call.1} parent=5 // pred_check
        %p284 = pneg %p283
      $region30: #{tpu_custom_call.1} parent=5 // pred_check_branch
        %286 = sbr.rel (%p284) target = $region32
      $region31: #{tpu_custom_call.1} parent=5 // pred_region
        // Predicated region
        $region33: #{tpu_custom_call.1} parent=31 // pred_check
          %p287 = pneg %p44
        $region34: #{tpu_custom_call.1} parent=31 // pred_check_branch
          %289 = sbr.rel (%p287) target = $region36
        $region35: #{tpu_custom_call.1} parent=31 // pred_region
          %s290 = sand.u32 %s34, 1
          %s291 = scalar_lea.sflag [#allocation3], %s290
          %s292 = sand.u32 %s34, 1
          %s293 = smul.addr %s292, 8
          %s294 = scalar_lea.vmem [#allocation2], %s293
          %296 = vsyncadd %s291, 0
          %s297 = smul.addr %s24, 8
          %s298 = scalar_lea.hbm %s0, %s297
          %s300 = sshll.u32 %s298, 4
          %s301 = int_to_ptr.hbm [resolvable:$true] %s300
          %s302 = sshll.u32 %s294, 4
          %s303 = int_to_ptr.vmem [resolvable:$true] %s302
          %305 = dma.hbm_to_vmem [thread:$0]  %s301, 128, %s303, %s291
        $region36: #{tpu_custom_call.1} parent=31 // pred_fallthru
          _
        // Predicated region
        $region37: #{tpu_custom_call.1} parent=31 // pred_check
          %p306 = pneg %p70
        $region38: #{tpu_custom_call.1} parent=31 // pred_check_branch
          %308 = sbr.rel (%p306) target = $region40
        $region39: #{tpu_custom_call.1} parent=31 // pred_region
          %s309 = sand.u32 %s24, 1
          %s310 = scalar_lea.sflag [#allocation6], %s309
          %s311 = sand.u32 %s60, 1
          %s312 = smul.addr %s311, 8
          %s313 = scalar_lea.vmem [#allocation5], %s312
          %315 = vsyncadd %s310, 0
          %s316 = smul.addr %s24, 8
          %s317 = scalar_lea.hbm %s1, %s316
          %s319 = sshll.u32 %s317, 4
          %s320 = int_to_ptr.hbm [resolvable:$true] %s319
          %s321 = sshll.u32 %s313, 4
          %s322 = int_to_ptr.vmem [resolvable:$true] %s321
          %324 = dma.hbm_to_vmem [thread:$0]  %s320, 128, %s322, %s310
        $region40: #{tpu_custom_call.1} parent=31 // pred_fallthru
          _
        // Predicated region
        $region41: #{tpu_custom_call.1} parent=31 // pred_check
          %p325 = pneg %p96
        $region42: #{tpu_custom_call.1} parent=31 // pred_check_branch
          %327 = sbr.rel (%p325) target = $region44
        $region43: #{tpu_custom_call.1} parent=31 // pred_region
          %s328 = sand.u32 %s24, 1
          %s329 = scalar_lea.sflag [#allocation6], %s328
          %s330 = sand.u32 %s86, 1
          %s331 = smul.addr %s330, 8
          %s332 = scalar_lea.vmem [#allocation7], %s331
          %334 = vsyncadd %s329, 0
          %s335 = smul.addr %s24, 8
          %s336 = scalar_lea.hbm %s2, %s335
          %s338 = sshll.u32 %s336, 4
          %s339 = int_to_ptr.hbm [resolvable:$true] %s338
          %s340 = sshll.u32 %s332, 4
          %s341 = int_to_ptr.vmem [resolvable:$true] %s340
          %343 = dma.hbm_to_vmem [thread:$0]  %s339, 128, %s341, %s329
        $region44: #{tpu_custom_call.1} parent=31 // pred_fallthru
          _
      $region32: #{tpu_custom_call.1} parent=5 // pred_fallthru
        _
      %p344 = scmp.le.s32.totalorder 1, %s24
      %p345 = scmp.lt.s32.totalorder %s24, 3
      %p346 = pnand %p344, %p345
      %p347 = pneg %p346
      // Predicated region
      $region45: #{tpu_custom_call.1} parent=5 // pred_check
        _
      $region46: #{tpu_custom_call.1} parent=5 // pred_check_branch
        %349 = sbr.rel (%p346) target = $region48
      $region47: #{tpu_custom_call.1} parent=5 // pred_region
        %s350 = ssub.s32 %s24, 1
        %s351 = sand.u32 %s37, 1
        %s352 = scalar_lea.sflag [#allocation3], %s351
        %s353 = sand.u32 %s37, 1
        %s354 = smul.addr %s353, 8
        %s355 = scalar_lea.vmem [#allocation2], %s354
        // Predicated region
        $region49: #{tpu_custom_call.1} parent=47 // pred_check
          %p356 = pneg %p50
        $region50: #{tpu_custom_call.1} parent=47 // pred_check_branch
          %358 = sbr.rel (%p356) target = $region52
        $region51: #{tpu_custom_call.1} parent=47 // pred_region
          %360 = dma.done %s352, 128
        $region52: #{tpu_custom_call.1} parent=47 // pred_fallthru
          _
        %s361 = sand.u32 %s29, 1
        %s362 = scalar_lea.sflag [#allocation6], %s361
        %s363 = sand.u32 %s63, 1
        %s364 = smul.addr %s363, 8
        %s365 = scalar_lea.vmem [#allocation5], %s364
        // Predicated region
        $region53: #{tpu_custom_call.1} parent=47 // pred_check
          %p366 = pneg %p76
        $region54: #{tpu_custom_call.1} parent=47 // pred_check_branch
          %368 = sbr.rel (%p366) target = $region56
        $region55: #{tpu_custom_call.1} parent=47 // pred_region
          %370 = dma.done %s362, 128
        $region56: #{tpu_custom_call.1} parent=47 // pred_fallthru
          _
        %s371 = sand.u32 %s29, 1
        %s372 = scalar_lea.sflag [#allocation6], %s371
        %s373 = sand.u32 %s89, 1
        %s374 = smul.addr %s373, 8
        %s375 = scalar_lea.vmem [#allocation7], %s374
        // Predicated region
        $region57: #{tpu_custom_call.1} parent=47 // pred_check
          %p376 = pneg %p102
        $region58: #{tpu_custom_call.1} parent=47 // pred_check_branch
          %378 = sbr.rel (%p376) target = $region60
        $region59: #{tpu_custom_call.1} parent=47 // pred_region
          %380 = dma.done %s372, 128
        $region60: #{tpu_custom_call.1} parent=47 // pred_fallthru
          _
        // Predicated region
        $region61: #{tpu_custom_call.1} parent=47 // pred_check
          %p381 = pneg %p123
        $region62: #{tpu_custom_call.1} parent=47 // pred_check_branch
          %383 = sbr.rel (%p381) target = $region64
        $region63: #{tpu_custom_call.1} parent=47 // pred_region
          %385 = dma.done [#allocation9], 256
        $region64: #{tpu_custom_call.1} parent=47 // pred_fallthru
          _
        // Predicated region
        $region65: #{tpu_custom_call.1} parent=47 // pred_check
          %p386 = pneg %p144
        $region66: #{tpu_custom_call.1} parent=47 // pred_check_branch
          %388 = sbr.rel (%p386) target = $region68
        $region67: #{tpu_custom_call.1} parent=47 // pred_region
          %390 = dma.done [#allocation9], 256
        $region68: #{tpu_custom_call.1} parent=47 // pred_fallthru
          _
        // Predicated region
        $region69: #{tpu_custom_call.1} parent=47 // pred_check
          %p391 = pneg %p165
        $region70: #{tpu_custom_call.1} parent=47 // pred_check_branch
          %393 = sbr.rel (%p391) target = $region72
        $region71: #{tpu_custom_call.1} parent=47 // pred_region
          %395 = dma.done [#allocation12], 256
        $region72: #{tpu_custom_call.1} parent=47 // pred_fallthru
          _
        // Predicated region
        $region73: #{tpu_custom_call.1} parent=47 // pred_check
          %p396 = pneg %p186
        $region74: #{tpu_custom_call.1} parent=47 // pred_check_branch
          %398 = sbr.rel (%p396) target = $region76
        $region75: #{tpu_custom_call.1} parent=47 // pred_region
          %400 = dma.done [#allocation12], 256
        $region76: #{tpu_custom_call.1} parent=47 // pred_fallthru
          _
        %s401 = sand.u32 %s37, 1
        %s402 = scalar_lea.sflag [#allocation3], %s401
        %s403 = sand.u32 %s37, 1
        %s404 = smul.addr %s403, 8
        %s405 = scalar_lea.vmem [#allocation2], %s404
        %p406 = pneg %p50
        %p407 = pneg %p47
        %s408 = sand.u32 %s29, 1
        %s409 = scalar_lea.sflag [#allocation6], %s408
        %s410 = sand.u32 %s63, 1
        %s411 = smul.addr %s410, 8
        %s412 = scalar_lea.vmem [#allocation5], %s411
        %p413 = pneg %p76
        %p414 = pneg %p73
        %s415 = sand.u32 %s29, 1
        %s416 = scalar_lea.sflag [#allocation6], %s415
        %s417 = sand.u32 %s89, 1
        %s418 = smul.addr %s417, 8
        %s419 = scalar_lea.vmem [#allocation7], %s418
        %p420 = pneg %p102
        %p421 = pneg %p99
        %p422 = pneg %p123
        %p423 = pneg %p120
        %p424 = pneg %p144
        %p425 = pneg %p141
        %p426 = pneg %p165
        %p427 = pneg %p162
        %p428 = pneg %p186
        %p429 = pneg %p183
        %p430 = pneg %p212
        %p431 = pneg %p209
        %s432 = sand.u32 %s199, 1
        %s433 = scalar_lea.sflag [#allocation4], %s432
        %s434 = sand.u32 %s199, 1
        %s435 = smul.addr %s434, 8
        %s436 = scalar_lea.vmem [#allocation14], %s435
        %v438 = vld [vmem:[%s355] sm:$0xff]
        %v439 = vpack.c.bf16 %v438, %v438
        %v440 = vld [vmem:[%s365] sm:$0xff]
        %v441 = vpack.c.bf16 %v440, %v440
        %v442 = vld [vmem:[%s375] sm:$0xff]
        %v443 = vpack.c.bf16 %v442, %v442
        %v444 = vld [vmem:[#allocation8] sm:$0xf]
        %v445 = vld [vmem:[#allocation8 + $0x4] sm:$0xf]
        %v446 = vld [vmem:[#allocation8 + $0x8] sm:$0xf]
        %v447 = vld [vmem:[#allocation8 + $0xc] sm:$0xf]
        %v452 = vunpack.c.l.b16 %v444
        %v453 = vunpack.c.l.b16 %v445
        %v454 = vunpack.c.l.b16 %v446
        %v455 = vunpack.c.l.b16 %v447
        %v456 = vpack.c.b16 %v453, %v452
        %v457 = vpack.c.b16 %v455, %v454
        %vm460 = vcmask 261120
        %v462 = vsel %vm460, %v439, 0
        %464 = vmatpush.bf16.msra.mxu0 0
        %465 = vmatpush.bf16.msra.mxu0 0
        %466 = vmatpush.bf16.msra.mxu0 0
        %467 = vmatpush.bf16.msra.mxu0 0
        %468 = vmatpush.bf16.msra.mxu0 0
        %469 = vmatpush.bf16.msra.mxu0 0
        %470 = vmatpush.bf16.msra.mxu0 %v457
        %471 = vmatpush.bf16.msra.mxu0 %v456
        %472 = vmatmul.bf16.gmra.mxu0 %v462
        %v473 = vpop.f32.mrf.mxu0
        %v474 = vadd.f32 0.0, %v473
        %v475 = vpop.f32.mrf.mxu0
        %476 = vdwg.mxu0
        %v477 = vpack.c.bf16 %v474, %v474
        %v478 = vld [vmem:[#allocation10] sm:$0xf]
        %v479 = vld [vmem:[#allocation10 + $0x4] sm:$0xf]
        %v480 = vld [vmem:[#allocation10 + $0x8] sm:$0xf]
        %v481 = vld [vmem:[#allocation10 + $0xc] sm:$0xf]
        %v486 = vunpack.c.l.b16 %v478
        %v487 = vunpack.c.l.b16 %v479
        %v488 = vunpack.c.l.b16 %v480
        %v489 = vunpack.c.l.b16 %v481
        %v490 = vpack.c.b16 %v487, %v486
        %v491 = vpack.c.b16 %v489, %v488
        %v495 = vsel %vm460, %v441, 0
        %497 = vmatpush.bf16.msra.mxu0 0
        %498 = vmatpush.bf16.msra.mxu0 0
        %499 = vmatpush.bf16.msra.mxu0 0
        %500 = vmatpush.bf16.msra.mxu0 0
        %501 = vmatpush.bf16.msra.mxu0 0
        %502 = vmatpush.bf16.msra.mxu0 0
        %503 = vmatpush.bf16.msra.mxu0 %v491
        %504 = vmatpush.bf16.msra.mxu0 %v490
        %505 = vmatmul.bf16.gmra.mxu0 %v495
        %v506 = vpop.f32.mrf.mxu0
        %v507 = vadd.f32 0.0, %v506
        %v508 = vpop.f32.mrf.mxu0
        %509 = vdwg.mxu0
        %v510 = vpack.c.bf16 %v507, %v507
        %v511 = vld [vmem:[#allocation11] sm:$0xf]
        %v512 = vld [vmem:[#allocation11 + $0x4] sm:$0xf]
        %v513 = vld [vmem:[#allocation11 + $0x8] sm:$0xf]
        %v514 = vld [vmem:[#allocation11 + $0xc] sm:$0xf]
        %v519 = vunpack.c.l.b16 %v511
        %v520 = vunpack.c.l.b16 %v512
        %v521 = vunpack.c.l.b16 %v513
        %v522 = vunpack.c.l.b16 %v514
        %v523 = vpack.c.b16 %v520, %v519
        %v524 = vpack.c.b16 %v522, %v521
        %v528 = vsel %vm460, %v443, 0
        %530 = vmatpush.bf16.msra.mxu0 0
        %531 = vmatpush.bf16.msra.mxu0 0
        %532 = vmatpush.bf16.msra.mxu0 0
        %533 = vmatpush.bf16.msra.mxu0 0
        %534 = vmatpush.bf16.msra.mxu0 0
        %535 = vmatpush.bf16.msra.mxu0 0
        %536 = vmatpush.bf16.msra.mxu0 %v524
        %537 = vmatpush.bf16.msra.mxu0 %v523
        %538 = vmatmul.bf16.gmra.mxu0 %v528
        %v539 = vpop.f32.mrf.mxu0
        %v540 = vadd.f32 0.0, %v539
        %v541 = vpop.f32.mrf.mxu0
        %542 = vdwg.mxu0
        %v543 = vpack.c.bf16 %v540, %v540
        %vm544 = vcmask 130048
        %v546 = vsel %vm544, %v477, 0
        %v549 = vsel %vm544, %v510, 0
        %551 = vmatpush.bf16.xpose.msra.mxu0 0
        %552 = vmatpush.bf16.xpose.msra.mxu0 0
        %553 = vmatpush.bf16.xpose.msra.mxu0 0
        %554 = vmatpush.bf16.xpose.msra.mxu0 0
        %555 = vmatpush.bf16.xpose.msra.mxu0 0
        %556 = vmatpush.bf16.xpose.msra.mxu0 0
        %557 = vmatpush.bf16.xpose.msra.mxu0 0
        %558 = vmatpush.bf16.xpose.msra.mxu0 %v549
        %559 = vmatmul.bf16.gmra.mxu0 %v546
        %v560 = vpop.f32.mrf.mxu0
        %v561 = vadd.f32 0.0, %v560
        %v562 = vpop.f32.mrf.mxu0
        %563 = vdwg.mxu0
        %vm564 = vcmask 64512
        %v565 = vsel %vm564, %v561, -inf
        %566 = vmax.xlane.f32.xlu0 %v565
        %v567 = vpop.xlane.xlu0 %566
        %v568 = vsub.f32 %v561, %v567
        %v569 = vmul.f32 %v568, 1.442695
        %v570 = vpow.pop %v569
        %v571 = vsel %vm564, %v570, 0.0
        %572 = vadd.xlane.f32.xlu0 %v571
        %v573 = vpop.xlane.xlu0 %572
        %v574 = vrcp.pop %v573
        %v575 = vmul.f32 %v570, %v574
        %v576 = vpack.c.bf16 %v575, %v575
        %v578 = vsel %vm564, %v576, 0
        %vm580 = vcmask 1043456
        %v582 = vsel %vm580, %v543, 0
        %584 = vmatpush.bf16.msra.mxu0 0
        %585 = vmatpush.bf16.msra.mxu0 0
        %586 = vmatpush.bf16.msra.mxu0 0
        %587 = vmatpush.bf16.msra.mxu0 0
        %588 = vmatpush.bf16.msra.mxu0 0
        %589 = vmatpush.bf16.msra.mxu0 0
        %590 = vmatpush.bf16.msra.mxu0 0
        %591 = vmatpush.bf16.msra.mxu0 %v582
        %592 = vmatmul.bf16.gmra.mxu0 %v578
        %v593 = vpop.f32.mrf.mxu0
        %v594 = vadd.f32 0.0, %v593
        %v595 = vpop.f32.mrf.mxu0
        %596 = vdwg.mxu0
        %v597 = vpack.c.bf16 %v594, %v594
        %v599 = vunpack.c.l.b16 %v477
        %v600 = vpack.c.b16 %v599, %v599
        %601 = vrot.lane.b32.xlu0 %v600, 112
        %v602 = vpop.permute.xlu0 %601
        %v604 = vunpack.c.l.b16 %v510
        %v605 = vpack.c.b16 %v604, %v604
        %606 = vrot.lane.b32.xlu0 %v605, 112
        %v607 = vpop.permute.xlu0 %606
        %v609 = vsel %vm544, %v602, 0
        %v612 = vsel %vm544, %v607, 0
        %614 = vmatpush.bf16.xpose.msra.mxu0 0
        %615 = vmatpush.bf16.xpose.msra.mxu0 0
        %616 = vmatpush.bf16.xpose.msra.mxu0 0
        %617 = vmatpush.bf16.xpose.msra.mxu0 0
        %618 = vmatpush.bf16.xpose.msra.mxu0 0
        %619 = vmatpush.bf16.xpose.msra.mxu0 0
        %620 = vmatpush.bf16.xpose.msra.mxu0 0
        %621 = vmatpush.bf16.xpose.msra.mxu0 %v612
        %622 = vmatmul.bf16.gmra.mxu0 %v609
        %v623 = vpop.f32.mrf.mxu0
        %v624 = vadd.f32 0.0, %v623
        %v625 = vpop.f32.mrf.mxu0
        %626 = vdwg.mxu0
        %v627 = vsel %vm564, %v624, -inf
        %628 = vmax.xlane.f32.xlu0 %v627
        %v629 = vpop.xlane.xlu0 %628
        %v630 = vsub.f32 %v624, %v629
        %v631 = vmul.f32 %v630, 1.442695
        %v632 = vpow.pop %v631
        %v633 = vsel %vm564, %v632, 0.0
        %634 = vadd.xlane.f32.xlu0 %v633
        %v635 = vpop.xlane.xlu0 %634
        %v636 = vrcp.pop %v635
        %v637 = vmul.f32 %v632, %v636
        %v638 = vpack.c.bf16 %v637, %v637
        %v640 = vunpack.c.l.b16 %v543
        %v641 = vpack.c.b16 %v640, %v640
        %642 = vrot.lane.b32.xlu0 %v641, 120
        %v643 = vpop.permute.xlu0 %642
        %v645 = vsel %vm564, %v638, 0
        %v648 = vsel %vm580, %v643, 0
        %650 = vmatpush.bf16.msra.mxu0 0
        %651 = vmatpush.bf16.msra.mxu0 0
        %652 = vmatpush.bf16.msra.mxu0 0
        %653 = vmatpush.bf16.msra.mxu0 0
        %654 = vmatpush.bf16.msra.mxu0 0
        %655 = vmatpush.bf16.msra.mxu0 0
        %656 = vmatpush.bf16.msra.mxu0 0
        %657 = vmatpush.bf16.msra.mxu0 %v648
        %658 = vmatmul.bf16.gmra.mxu0 %v645
        %v659 = vpop.f32.mrf.mxu0
        %v660 = vadd.f32 0.0, %v659
        %v661 = vpop.f32.mrf.mxu0
        %662 = vdwg.mxu0
        %v663 = vpack.c.bf16 %v660, %v660
        %664 = vrot.lane.b32.xlu0 %v600, 96
        %v665 = vpop.permute.xlu0 %664
        %666 = vrot.lane.b32.xlu0 %v605, 96
        %v667 = vpop.permute.xlu0 %666
        %v669 = vsel %vm544, %v665, 0
        %v672 = vsel %vm544, %v667, 0
        %674 = vmatpush.bf16.xpose.msra.mxu0 0
        %675 = vmatpush.bf16.xpose.msra.mxu0 0
        %676 = vmatpush.bf16.xpose.msra.mxu0 0
        %677 = vmatpush.bf16.xpose.msra.mxu0 0
        %678 = vmatpush.bf16.xpose.msra.mxu0 0
        %679 = vmatpush.bf16.xpose.msra.mxu0 0
        %680 = vmatpush.bf16.xpose.msra.mxu0 0
        %681 = vmatpush.bf16.xpose.msra.mxu0 %v672
        %682 = vmatmul.bf16.gmra.mxu0 %v669
        %v683 = vpop.f32.mrf.mxu0
        %v684 = vadd.f32 0.0, %v683
        %v685 = vpop.f32.mrf.mxu0
        %686 = vdwg.mxu0
        %v687 = vsel %vm564, %v684, -inf
        %688 = vmax.xlane.f32.xlu0 %v687
        %v689 = vpop.xlane.xlu0 %688
        %v690 = vsub.f32 %v684, %v689
        %v691 = vmul.f32 %v690, 1.442695
        %v692 = vpow.pop %v691
        %v693 = vsel %vm564, %v692, 0.0
        %694 = vadd.xlane.f32.xlu0 %v693
        %v695 = vpop.xlane.xlu0 %694
        %v696 = vrcp.pop %v695
        %v697 = vmul.f32 %v692, %v696
        %v698 = vpack.c.bf16 %v697, %v697
        %699 = vrot.lane.b32.xlu0 %v641, 112
        %v700 = vpop.permute.xlu0 %699
        %v702 = vsel %vm564, %v698, 0
        %v705 = vsel %vm580, %v700, 0
        %707 = vmatpush.bf16.msra.mxu0 0
        %708 = vmatpush.bf16.msra.mxu0 0
        %709 = vmatpush.bf16.msra.mxu0 0
        %710 = vmatpush.bf16.msra.mxu0 0
        %711 = vmatpush.bf16.msra.mxu0 0
        %712 = vmatpush.bf16.msra.mxu0 0
        %713 = vmatpush.bf16.msra.mxu0 0
        %714 = vmatpush.bf16.msra.mxu0 %v705
        %715 = vmatmul.bf16.gmra.mxu0 %v702
        %v716 = vpop.f32.mrf.mxu0
        %v717 = vadd.f32 0.0, %v716
        %v718 = vpop.f32.mrf.mxu0
        %719 = vdwg.mxu0
        %v720 = vpack.c.bf16 %v717, %v717
        %721 = vrot.lane.b32.xlu0 %v600, 80
        %v722 = vpop.permute.xlu0 %721
        %723 = vrot.lane.b32.xlu0 %v605, 80
        %v724 = vpop.permute.xlu0 %723
        %v726 = vsel %vm544, %v722, 0
        %v729 = vsel %vm544, %v724, 0
        %731 = vmatpush.bf16.xpose.msra.mxu0 0
        %732 = vmatpush.bf16.xpose.msra.mxu0 0
        %733 = vmatpush.bf16.xpose.msra.mxu0 0
        %734 = vmatpush.bf16.xpose.msra.mxu0 0
        %735 = vmatpush.bf16.xpose.msra.mxu0 0
        %736 = vmatpush.bf16.xpose.msra.mxu0 0
        %737 = vmatpush.bf16.xpose.msra.mxu0 0
        %738 = vmatpush.bf16.xpose.msra.mxu0 %v729
        %739 = vmatmul.bf16.gmra.mxu0 %v726
        %v740 = vpop.f32.mrf.mxu0
        %v741 = vadd.f32 0.0, %v740
        %v742 = vpop.f32.mrf.mxu0
        %743 = vdwg.mxu0
        %v744 = vsel %vm564, %v741, -inf
        %745 = vmax.xlane.f32.xlu0 %v744
        %v746 = vpop.xlane.xlu0 %745
        %v747 = vsub.f32 %v741, %v746
        %v748 = vmul.f32 %v747, 1.442695
        %v749 = vpow.pop %v748
        %v750 = vsel %vm564, %v749, 0.0
        %751 = vadd.xlane.f32.xlu0 %v750
        %v752 = vpop.xlane.xlu0 %751
        %v753 = vrcp.pop %v752
        %v754 = vmul.f32 %v749, %v753
        %v755 = vpack.c.bf16 %v754, %v754
        %756 = vrot.lane.b32.xlu0 %v641, 104
        %v757 = vpop.permute.xlu0 %756
        %v759 = vsel %vm564, %v755, 0
        %v762 = vsel %vm580, %v757, 0
        %764 = vmatpush.bf16.msra.mxu0 0
        %765 = vmatpush.bf16.msra.mxu0 0
        %766 = vmatpush.bf16.msra.mxu0 0
        %767 = vmatpush.bf16.msra.mxu0 0
        %768 = vmatpush.bf16.msra.mxu0 0
        %769 = vmatpush.bf16.msra.mxu0 0
        %770 = vmatpush.bf16.msra.mxu0 0
        %771 = vmatpush.bf16.msra.mxu0 %v762
        %772 = vmatmul.bf16.gmra.mxu0 %v759
        %v773 = vpop.f32.mrf.mxu0
        %v774 = vadd.f32 0.0, %v773
        %v775 = vpop.f32.mrf.mxu0
        %776 = vdwg.mxu0
        %v777 = vpack.c.bf16 %v774, %v774
        %v779 = vunpack.c.l.b16 %v663
        %v780 = vpack.c.b16 %v779, %v779
        %781 = vrot.lane.b32.xlu0 %v780, 8
        %v782 = vpop.permute.xlu0 %781
        %v784 = vunpack.c.l.b16 %v720
        %v785 = vpack.c.b16 %v784, %v784
        %786 = vrot.lane.b32.xlu0 %v785, 16
        %v787 = vpop.permute.xlu0 %786
        %v789 = vunpack.c.l.b16 %v777
        %v790 = vpack.c.b16 %v789, %v789
        %791 = vrot.lane.b32.xlu0 %v790, 24
        %v792 = vpop.permute.xlu0 %791
        %v795 = vsel %vm564, %v597, %v782
        %v797 = vsel %vm544, %v795, %v787
        %vm798 = vcmask 195584
        %v800 = vsel %vm798, %v797, %v792
        %v801 = vld [vmem:[#allocation13] sm:$0xf]
        %v802 = vld [vmem:[#allocation13 + $0x4] sm:$0xf]
        %v803 = vld [vmem:[#allocation13 + $0x8] sm:$0xf]
        %v804 = vld [vmem:[#allocation13 + $0xc] sm:$0xf]
        %v809 = vunpack.c.l.b16 %v801
        %v810 = vunpack.c.l.b16 %v802
        %v811 = vunpack.c.l.b16 %v803
        %v812 = vunpack.c.l.b16 %v804
        %v813 = vpack.c.b16 %v810, %v809
        %v814 = vpack.c.b16 %v812, %v811
        %v817 = vsel %vm460, %v800, 0
        %819 = vmatpush.bf16.msra.mxu0 0
        %820 = vmatpush.bf16.msra.mxu0 0
        %821 = vmatpush.bf16.msra.mxu0 0
        %822 = vmatpush.bf16.msra.mxu0 0
        %823 = vmatpush.bf16.msra.mxu0 0
        %824 = vmatpush.bf16.msra.mxu0 0
        %825 = vmatpush.bf16.msra.mxu0 %v814
        %826 = vmatpush.bf16.msra.mxu0 %v813
        %827 = vmatmul.bf16.gmra.mxu0 %v817
        %v828 = vpop.f32.mrf.mxu0
        %v829 = vadd.f32 0.0, %v828
        %v830 = vpop.f32.mrf.mxu0
        %831 = vdwg.mxu0
        %832 = vst.msk [vmem:[%s436] sm:$0xff] %vm460, %v829
        %s833 = sand.u32 %s199, 1
        %s834 = scalar_lea.sflag [#allocation4], %s833
        %s835 = sand.u32 %s199, 1
        %s836 = smul.addr %s835, 8
        %s837 = scalar_lea.vmem [#allocation14], %s836
        // Predicated region
        $region77: #{tpu_custom_call.1} parent=47 // pred_check
          %p838 = pneg %p209
        $region78: #{tpu_custom_call.1} parent=47 // pred_check_branch
          %840 = sbr.rel (%p838) target = $region80
        $region79: #{tpu_custom_call.1} parent=47 // pred_region
          %842 = vsyncadd %s834, 0
          %s843 = smul.addr %s29, 8
          %s844 = scalar_lea.hbm %s7, %s843
          %s846 = sshll.u32 %s837, 4
          %s847 = int_to_ptr.vmem [resolvable:$true] %s846
          %s848 = sshll.u32 %s844, 4
          %s849 = int_to_ptr.hbm [resolvable:$true] %s848
          %851 = dma.vmem_to_hbm [thread:$0]  %s847, 128, %s849, %s834
        $region80: #{tpu_custom_call.1} parent=47 // pred_fallthru
          _
      $region48: #{tpu_custom_call.1} parent=5 // pred_fallthru
        _
      %p852 = scmp.le.s32.totalorder 2, %s24
      // Predicated region
      $region81: #{tpu_custom_call.1} parent=5 // pred_check
        %p853 = pneg %p852
      $region82: #{tpu_custom_call.1} parent=5 // pred_check_branch
        %855 = sbr.rel (%p853) target = $region84
      $region83: #{tpu_custom_call.1} parent=5 // pred_region
        %s856 = ssub.s32 %s24, 2
        // Predicated region
        $region85: #{tpu_custom_call.1} parent=83 // pred_check
          %p857 = pneg %p215
        $region86: #{tpu_custom_call.1} parent=83 // pred_check_branch
          %859 = sbr.rel (%p857) target = $region88
        $region87: #{tpu_custom_call.1} parent=83 // pred_region
          %s860 = sand.u32 %s200, 1
          %s861 = scalar_lea.sflag [#allocation4], %s860
          %s862 = sand.u32 %s200, 1
          %s863 = smul.addr %s862, 8
          %s864 = scalar_lea.vmem [#allocation14], %s863
          %866 = dma.done %s861, 128
        $region88: #{tpu_custom_call.1} parent=83 // pred_fallthru
          _
      $region84: #{tpu_custom_call.1} parent=5 // pred_fallthru
        _
    $region6: #{tpu_custom_call.1} parent=1 // loop_footer
      %s28 = sadd.s32 1, %s24
    $region7: #{tpu_custom_call.1} parent=1 // loop_footer_branch
      %23 = sbr.rel target = $region3
    $region8: #{tpu_custom_call.1} parent=1 // loop_exit
      _
    %867 = vsyncpa [#allocation3], 1
    %s868 = scalar_lea.sflag [#allocation3], 1
    %869 = vsyncpa %s868, 1
    %870 = vsyncpa [#allocation6], 1
    %s871 = scalar_lea.sflag [#allocation6], 1
    %872 = vsyncpa %s871, 1
    %873 = vsyncpa [#allocation9], 1
    %874 = vsyncpa [#allocation12], 1
    %875 = vsyncpa [#allocation4], 1
    %s876 = scalar_lea.sflag [#allocation4], 1
    %877 = vsyncpa %s876, 1

</llo_original>
